<compile_context>
chip_gen: v6e
topology: v6e:2x2x1
jax: 0.10.0
libtpu: 0.0.40
codegen_flags: <defaults>
</compile_context>

<pallas_src>
import functools
import numpy as np

import jax
import jax.numpy as jnp
from jax.experimental import pallas as pl
from jax.experimental.pallas import tpu as pltpu


# --------------------------------------------------------------------------
# Motion-kernel construction (port of kornia.get_motion_kernel3d, batch = 1).
# Pure host-side numpy: deterministic "parameters" built once at __init__.
# --------------------------------------------------------------------------
def _angle_axis_to_rotation_matrix(angle_axis, eps=1e-6):
    theta2 = float(np.dot(angle_axis, angle_axis))
    if theta2 > eps:
        theta = np.sqrt(theta2)
        wx, wy, wz = angle_axis / (theta + eps)
        c, s = np.cos(theta), np.sin(theta)
        R = np.array(
            [
                [c + wx * wx * (1 - c), wx * wy * (1 - c) - wz * s, wy * s + wx * wz * (1 - c)],
                [wz * s + wx * wy * (1 - c), c + wy * wy * (1 - c), -wx * s + wy * wz * (1 - c)],
                [-wy * s + wx * wz * (1 - c), wx * s + wy * wz * (1 - c), c + wz * wz * (1 - c)],
            ],
            dtype=np.float64,
        )
    else:  # small-angle Taylor branch (matches kornia)
        rx, ry, rz = angle_axis
        R = np.array([[1.0, -rz, ry], [rz, 1.0, -rx], [-ry, rx, 1.0]], dtype=np.float64)
    return R


def _normal_transform_pixel3d(d, h, w):
    tr = np.eye(4, dtype=np.float64)
    tr[0, 3] = tr[1, 3] = tr[2, 3] = -1.0
    tr[0, 0] = 2.0 / (w - 1)
    tr[1, 1] = 2.0 / (h - 1)
    tr[2, 2] = 2.0 / (d - 1)
    return tr


def get_motion_kernel3d(kernel_size, angle, direction, mode="nearest"):
    """Returns the (k, k, k) float32 motion filter, summing to 1."""
    assert isinstance(kernel_size, int) and kernel_size >= 3 and kernel_size % 2 == 1
    assert mode == "nearest"  # the MotionBlur3D module always uses 'nearest'
    k = kernel_size
    yaw, pitch, roll = angle

    # direction in [-1, 1] -> [0, 1]; line of weights along the W axis
    d = (np.clip(direction, -1.0, 1.0) + 1.0) / 2.0
    line = np.array([d + ((1 - 2 * d) / (k - 1)) * i for i in range(k)], dtype=np.float64)
    kern = np.zeros((k, k, k), dtype=np.float64)
    kern[k // 2, k // 2, :] = line

    # rotate3d(kernel, yaw, pitch, roll, mode='nearest', padding='zeros', align_corners=False)
    angle_axis = np.deg2rad(np.array([yaw, pitch, roll], dtype=np.float64))
    R = _angle_axis_to_rotation_matrix(angle_axis)
    center = np.array([(k - 1) / 2.0] * 3, dtype=np.float64)
    M = np.eye(4, dtype=np.float64)
    M[:3, :3] = R
    M[:3, 3] = center - R @ center  # rotate about the volume center

    N = _normal_transform_pixel3d(k, k, k)
    dst_norm_trans_src_norm = N @ M @ np.linalg.inv(N)
    P = np.linalg.inv(dst_norm_trans_src_norm)[:3, :]  # src_norm <- dst_norm, 3x4

    rotated = np.zeros_like(kern)
    for z in range(k):
        for y in range(k):
            for x in range(k):
                xn = (2 * x + 1) / k - 1.0
                yn = (2 * y + 1) / k - 1.0
                zn = (2 * z + 1) / k - 1.0
                gx, gy, gz = P @ np.array([xn, yn, zn, 1.0])
                ix = ((gx + 1.0) * k - 1.0) / 2.0
                iy = ((gy + 1.0) * k - 1.0) / 2.0
                iz = ((gz + 1.0) * k - 1.0) / 2.0
                jx, jy, jz = int(np.rint(ix)), int(np.rint(iy)), int(np.rint(iz))
                if 0 <= jx < k and 0 <= jy < k and 0 <= jz < k:
                    rotated[z, y, x] = kern[jz, jy, jx]
                # else: zeros padding
    s = rotated.sum()
    if not np.isfinite(s) or s <= 0.0:
        # NOTE: deliberate deviation from kornia.  When every resampled line
        # voxel lands out of bounds the kornia code divides by zero (NaN
        # output); we fall back to the unrotated line instead so the filter
        # stays a valid normalized blur.  Flagged per review.
        rotated = kern
    rotated = rotated / rotated.sum()
    return rotated.astype(np.float32)


# --------------------------------------------------------------------------
# Pallas kernels: sparse depthwise 3D cross-correlation (the filter3D hot path).
# --------------------------------------------------------------------------
_PAD_MODE = {"constant": "constant", "reflect": "reflect",
             "replicate": "edge", "circular": "wrap"}


def _round_up(x, m):
    return ((x + m - 1) // m) * m


def _nonzero_taps(kernel_np):
    """Nonzero filter taps as a hashable tuple of (dz, dy, dx, weight)."""
    k = int(kernel_np.shape[0])
    taps = []
    for dz in range(k):
        for dy in range(k):
            for dx in range(k):
                w = float(kernel_np[dz, dy, dx])
                if w != 0.0:
                    taps.append((dz, dy, dx, w))
    if not taps:  # unreachable (filter sums to 1); keeps the kernel well formed
        taps.append((k // 2, k // 2, k // 2, 0.0))
    return tuple(taps)


@functools.lru_cache(maxsize=1)
def _tpu_vmem_hint():
    """(per-core VMEM bytes, likely-two-TensorCores).  Conservative on failure."""
    vmem = None
    try:
        vmem = int(pltpu.get_tpu_info().vmem_capacity_bytes)
    except Exception:
        vmem = None
    kind = ""
    try:
        kind = str(jax.devices()[0].device_kind).lower()
    except Exception:
        pass
    is_v7 = ("v7" in kind) or ("7x" in kind)
    if vmem is None or vmem <= 0:
        vmem = 64 << 20            # conservative default (v7x per-TC figure)
    if is_v7:
        vmem = min(vmem, 64 << 20)  # v7x: 64 MiB per TensorCore
    two_tc = is_v7 or vmem <= (96 << 20)
    return vmem, two_tc


def _pick_bc_tile(BC, per_row_bytes, budget_bytes, *, prefer_even_steps, sublane_tiled):
    """Largest divisor of BC whose per-step working set fits the VMEM budget.

    sublane_tiled: the BC tile is the second-minor (sublane) block dim of a 2D
    block, so keep it a multiple of 8 or equal to the full BC extent.
    prefer_even_steps: on two-TensorCore parts prefer an even step count so
    neither core idles on a tail step.
    """
    cap = max(1, budget_bytes // max(per_row_bytes, 1))
    divisors = [t for t in range(1, BC + 1) if BC % t == 0]
    if sublane_tiled:
        cand = [t for t in divisors if t % 8 == 0 or t == BC]
    else:
        cand = divisors
    fitting = [t for t in cand if t <= cap]
    pool = fitting or [min(cand)]   # nothing fits the (conservative) budget:
    # take the smallest legal tile and rely on vmem_limit_bytes headroom.
    # TODO(synk): tile along D as well for volumes too large for a 1-row tile.
    if prefer_even_steps:
        for pred in (lambda t: (BC // t) % 2 == 0 and BC // t >= 4,
                     lambda t: (BC // t) % 2 == 0):
            sub = [t for t in pool if pred(t)]
            if sub:
                return max(sub)
    return max(pool)


def _motion_flat_const_kernel(wm_ref, x_ref, o_ref, xp_ref, *, shifts, DHW, L, width):
    """Sparse depthwise 3D conv, 'constant' border, (z,y,x) flattened on lanes.

    wm_ref : (n_taps, DHW) f32  per-tap (weight * border-validity mask), resident
    x_ref  : (bc, DHW)          input rows for this grid step
    o_ref  : (bc, DHW)          output rows
    xp_ref : (bc, width) f32    shift-staging scratch: [halo | volume | halo]
    """
    bc = x_ref.shape[0]
    # Zero only the halo slabs (not the whole scratch), every step.  A one-shot
    # program_id()==0 init would be wrong under 'parallel' megacore sharding:
    # each TensorCore owns a private scratch and a different first iteration.
    if L > 0:
        xp_ref[:, :L] = jnp.zeros((bc, L), jnp.float32)
    right = width - (L + DHW)
    if right > 0:
        xp_ref[:, L + DHW:] = jnp.zeros((bc, right), jnp.float32)
    # Interior: single f32 staging pass, lane-aligned store (L % 128 == 0).
    xp_ref[:, L:L + DHW] = x_ref[...].astype(jnp.float32)

    acc = None
    for t, s in enumerate(shifts):
        shifted = xp_ref[:, L + s:L + s + DHW]   # one lane-realigned read per tap
        term = shifted * wm_ref[t:t + 1, :]      # weight & border mask folded in
        acc = term if acc is None else acc + term
    o_ref[...] = acc.astype(o_ref.dtype)


def _conv3d_prepadded_kernel(x_ref, o_ref, *, groups, D, H, W):
    """reflect / replicate / circular borders: input pre-padded in the wrapper.
    x_ref: (bc, D+2p, H+2p, W+2p); o_ref: (bc, D, H, W)."""
    acc = None
    for (dz, dy), dxw in groups:
        # one sublane-offset slice per (dz, dy) group, hoisted out of the dx loop
        xs = x_ref[:, dz:dz + D, dy:dy + H, :].astype(jnp.float32)
        for dx, w in dxw:
            term = w * xs[..., dx:dx + W]
            acc = term if acc is None else acc + term
    o_ref[...] = acc.astype(o_ref.dtype)


@functools.lru_cache(maxsize=None)
def _build_filter3d(BC, D, H, W, dtype, k, taps, border_type):
    dtype = np.dtype(dtype) if not hasattr(dtype, "itemsize") else dtype
    item = dtype.itemsize
    p = k // 2
    HW, DHW = H * W, D * H * W
    n_taps = len(taps)

    vmem_bytes, two_tc = _tpu_vmem_hint()
    budget = int(vmem_bytes * (0.45 if two_tc else 0.55))
    vmem_limit = int(vmem_bytes * 0.9)

    if border_type == "constant":
        # ---- lane-dense flat path: (BC, D*H*W) with D*H*W on the lane axis ----
        zz, yy, xx = np.meshgrid(np.arange(D), np.arange(H), np.arange(W),
                                 indexing="ij")
        zz, yy, xx = (a.reshape(-1) for a in (zz, yy, xx))
        shifts, rows = [], []
        for dz, dy, dx, w in taps:
            od, oh, ow = dz - p, dy - p, dx - p
            shifts.append(od * HW + oh * W + ow)
            valid = ((zz + od >= 0) & (zz + od < D)
                     & (yy + oh >= 0) & (yy + oh < H)
                     & (xx + ow >= 0) & (xx + ow < W))
            rows.append(np.float32(w) * valid.astype(np.float32))
        wmask = jnp.asarray(np.stack(rows, axis=0))          # (n_taps, DHW) f32
        shifts = tuple(shifts)
        s_min, s_max = min(shifts), max(shifts)
        L = _round_up(max(0, -s_min), 128)                   # lane-aligned interior
        width = _round_up(L + DHW + max(0, s_max), 128)

        per_row = (4 * item * DHW      # double-buffered input + output blocks
                   + 4 * width         # f32 shift-staging scratch
                   + 4 * DHW * 4)      # f32 accumulator + a few temporaries
        bc_tile = _pick_bc_tile(BC, per_row, budget,
                                prefer_even_steps=two_tc, sublane_tiled=True)

        body = functools.partial(_motion_flat_const_kernel,
                                 shifts=shifts, DHW=DHW, L=L, width=width)
        call = pl.pallas_call(
            body,
            out_shape=jax.ShapeDtypeStruct((BC, DHW), dtype),
            grid_spec=pltpu.PrefetchScalarGridSpec(
                num_scalar_prefetch=0,
                grid=(BC // bc_tile,),
                in_specs=[
                    pl.BlockSpec((n_taps, DHW), lambda i: (0, 0)),   # resident
                    pl.BlockSpec((bc_tile, DHW), lambda i: (i, 0)),
                ],
                out_specs=pl.BlockSpec((bc_tile, DHW), lambda i: (i, 0)),
                scratch_shapes=[pltpu.VMEM((bc_tile, width), jnp.float32)],
            ),
            compiler_params=pltpu.CompilerParams(
                dimension_semantics=("parallel",),
                vmem_limit_bytes=vmem_limit,
            ),
            cost_estimate=pl.CostEstimate(
                flops=2 * n_taps * BC * DHW,
                transcendentals=0,
                bytes_accessed=2 * BC * DHW * item + n_taps * DHW * 4,
            ),
        )

        def fn(x4):                                   # x4: (BC, D, H, W)
            out = call(wmask, x4.reshape(BC, DHW))    # contiguous reshape: free
            return out.reshape(BC, D, H, W)

        return jax.jit(fn)

    # ---- non-constant borders: pre-padded 4D path (reflect/replicate/circular)
    # TODO(synk): build the reflect/replicate/circular halos in-kernel instead
    # of the jnp.pad pass below (saves a full HBM read+write of the volume) and
    # make this path lane-dense like the 'constant' path.
    groups = {}
    for dz, dy, dx, w in taps:
        groups.setdefault((dz, dy), []).append((dx, w))
    groups = tuple((key, tuple(val)) for key, val in sorted(groups.items()))

    Dp, Hp, Wp = D + 2 * p, H + 2 * p, W + 2 * p
    per_row = (2 * Dp * Hp * Wp + 2 * D * H * W) * item + 4 * D * H * W * 6
    bc_tile = _pick_bc_tile(BC, per_row, budget,
                            prefer_even_steps=two_tc, sublane_tiled=False)

    body = functools.partial(_conv3d_prepadded_kernel, groups=groups, D=D, H=H, W=W)
    call = pl.pallas_call(
        body,
        out_shape=jax.ShapeDtypeStruct((BC, D, H, W), dtype),
        grid_spec=pltpu.PrefetchScalarGridSpec(
            num_scalar_prefetch=0,
            grid=(BC // bc_tile,),
            in_specs=[pl.BlockSpec((bc_tile, Dp, Hp, Wp), lambda i: (i, 0, 0, 0))],
            out_specs=pl.BlockSpec((bc_tile, D, H, W), lambda i: (i, 0, 0, 0)),
            scratch_shapes=[],
        ),
        compiler_params=pltpu.CompilerParams(
            dimension_semantics=("parallel",),
            vmem_limit_bytes=vmem_limit,
        ),
        cost_estimate=pl.CostEstimate(
            flops=2 * n_taps * BC * D * H * W,
            transcendentals=0,
            bytes_accessed=(BC * Dp * Hp * Wp + BC * D * H * W) * item,
        ),
    )

    def fn_padded(x4):
        xp = jnp.pad(x4, ((0, 0), (p, p), (p, p), (p, p)),
                     mode=_PAD_MODE[border_type])
        return call(xp)

    return jax.jit(fn_padded)


def filter3d_pallas(x, kernel, border_type="constant"):
    """x: (B, C, D, H, W); kernel: concrete host-side (k, k, k) array shared
    across batch & channels.  Matches kornia filter3D (torch conv3d =
    cross-correlation, 'same' padding)."""
    assert border_type in _PAD_MODE
    B, C, D, H, W = x.shape
    # The filter is a host-side constant (built at __init__); its nonzero taps
    # are baked into the kernel build.  A different filter / shape / dtype just
    # selects another cached build.  (Must not be a traced array.)
    kernel_np = np.asarray(kernel, dtype=np.float32)
    k = int(kernel_np.shape[0])
    taps = _nonzero_taps(kernel_np)
    BC = B * C
    fn = _build_filter3d(BC, D, H, W, np.dtype(x.dtype), k, taps, border_type)
    out = fn(x.reshape(BC, D, H, W))
    return out.reshape(B, C, D, H, W)


# --------------------------------------------------------------------------
# Module wrapper
# --------------------------------------------------------------------------
class MotionBlur3D:
    """Blur 3D volumes (5D NCDHW tensor) using the motion filter."""

    def __init__(self, kernel_size, angle, direction, border_type="constant"):
        assert border_type in ("constant", "reflect", "replicate", "circular")
        if isinstance(angle, float):
            angle = (angle, angle, angle)
        elif isinstance(angle, (tuple, list)) and len(angle) == 3:
            angle = tuple(float(a) for a in angle)
        else:
            raise ValueError(f"Expect angle to be either a float or a tuple of floats. Got {angle}.")
        self.kernel_size = kernel_size
        self.angle = angle
        self.direction = float(direction)
        self.border_type = border_type
        self._kernel_np = get_motion_kernel3d(kernel_size, angle, self.direction, "nearest")
        self.kernel = jnp.asarray(self._kernel_np)  # exposed for reference checks

    def __call__(self, x):
        return filter3d_pallas(x, self._kernel_np, self.border_type)


# Pure-JAX reference (same math, no Pallas) for sanity checking.
def _reference_filter3d(x, kernel, border_type="constant"):
    B, C, D, H, W = x.shape
    k = int(kernel.shape[0])
    p = k // 2
    xp = jnp.pad(x, ((0, 0), (0, 0), (p, p), (p, p), (p, p)), mode=_PAD_MODE[border_type])
    out = jnp.zeros_like(x)
    for dz in range(k):
        for dy in range(k):
            for dx in range(k):
                out = out + kernel[dz, dy, dx] * xp[:, :, dz:dz + D, dy:dy + H, dx:dx + W]
    return out


if __name__ == "__main__":
    key = jax.random.PRNGKey(0)
    # 5D NCDHW input: batch=2, channels=4, depth=8, height=16, width=16
    x = jax.random.normal(key, (2, 4, 8, 16, 16), dtype=jnp.float32)

    # constant border (default path: lane-dense flat layout, sparse masked taps)
    blur = MotionBlur3D(kernel_size=3, angle=(90.0, 45.0, 30.0), direction=0.5,
                        border_type="constant")
    y = blur(x)
    jax.block_until_ready(y)
    y_ref = _reference_filter3d(x, blur.kernel, blur.border_type)
    assert y.shape == x.shape, (y.shape, x.shape)
    assert jnp.allclose(y, y_ref, atol=1e-5, rtol=1e-5), float(jnp.max(jnp.abs(y - y_ref)))

    # also exercise the pre-padded (non-constant border) path
    blur2 = MotionBlur3D(kernel_size=5, angle=(10.0, 20.0, 30.0), direction=-0.3,
                         border_type="replicate")
    y2 = blur2(x)
    jax.block_until_ready(y2)
    y2_ref = _reference_filter3d(x, blur2.kernel, blur2.border_type)
    assert jnp.allclose(y2, y2_ref, atol=1e-5, rtol=1e-5), float(jnp.max(jnp.abs(y2 - y2_ref)))

    print("KERNEL_OK")
</pallas_src>

<mosaic_0001>
module attributes {stable_mosaic.version = 11 : i64} {
  func.func @_motion_flat_const_kernel(%arg0: i32, %arg1: memref<3x2048xf32, #tpu.memory_space<vmem>>, %arg2: memref<8x2048xf32, #tpu.memory_space<vmem>>, %arg3: memref<8x2048xf32, #tpu.memory_space<vmem>>, %arg4: memref<8x2304xf32, #tpu.memory_space<vmem>>) attributes {dimension_semantics = [#tpu.dimension_semantics<parallel>], iteration_bounds = array<i64: 1>, scalar_prefetch = 0 : i64, scratch_operands = 1 : i64, tpu.core_type = #tpu.core_type<tc>, window_params = [{pipeline_mode = #tpu.pipeline_mode<synchronous>, transform_indices = @transform_0, window_bounds = array<i64: 3, 2048>}, {transform_indices = @transform_1, window_bounds = array<i64: 8, 2048>}, {transform_indices = @transform_2, window_bounds = array<i64: 8, 2048>}]} {
    %cst = arith.constant 0.000000e+00 : f32
    %0 = vector.broadcast %cst : f32 to vector<8x128xf32>
    %c0 = arith.constant 0 : index
    %c0_0 = arith.constant 0 : index
    %1 = vector.load %arg4[%c0, %c0_0] : memref<8x2304xf32, #tpu.memory_space<vmem>>, vector<8x128xf32>
    tpu.vector_store %arg4[%c0, %c0_0], %0 {strides = array<i32>} : memref<8x2304xf32, #tpu.memory_space<vmem>>, vector<8x128xf32>,
    %cst_1 = arith.constant 0.000000e+00 : f32
    %2 = vector.broadcast %cst_1 : f32 to vector<8x128xf32>
    %c0_2 = arith.constant 0 : index
    %c2176 = arith.constant 2176 : index
    %3 = vector.load %arg4[%c0_2, %c2176] : memref<8x2304xf32, #tpu.memory_space<vmem>>, vector<8x128xf32>
    tpu.vector_store %arg4[%c0_2, %c2176], %2 {strides = array<i32>} : memref<8x2304xf32, #tpu.memory_space<vmem>>, vector<8x128xf32>,
    %c0_3 = arith.constant 0 : index
    %c0_4 = arith.constant 0 : index
    %4 = vector.load %arg2[%c0_3, %c0_4] : memref<8x2048xf32, #tpu.memory_space<vmem>>, vector<8x2048xf32>
    %c0_5 = arith.constant 0 : index
    %c128 = arith.constant 128 : index
    %5 = vector.load %arg4[%c0_5, %c128] : memref<8x2304xf32, #tpu.memory_space<vmem>>, vector<8x2048xf32>
    tpu.vector_store %arg4[%c0_5, %c128], %4 {strides = array<i32>} : memref<8x2304xf32, #tpu.memory_space<vmem>>, vector<8x2048xf32>,
    %c0_6 = arith.constant 0 : index
    %c111 = arith.constant 111 : index
    %6 = vector.load %arg4[%c0_6, %c111] : memref<8x2304xf32, #tpu.memory_space<vmem>>, vector<8x2048xf32>
    %c0_7 = arith.constant 0 : index
    %c0_8 = arith.constant 0 : index
    %7 = vector.load %arg1[%c0_7, %c0_8] : memref<3x2048xf32, #tpu.memory_space<vmem>>, vector<1x2048xf32>
    %8 = vector.broadcast %7 : vector<1x2048xf32> to vector<8x2048xf32>
    %9 = arith.mulf %6, %8 : vector<8x2048xf32>
    %c0_9 = arith.constant 0 : index
    %c128_10 = arith.constant 128 : index
    %10 = vector.load %arg4[%c0_9, %c128_10] : memref<8x2304xf32, #tpu.memory_space<vmem>>, vector<8x2048xf32>
    %c1 = arith.constant 1 : index
    %c0_11 = arith.constant 0 : index
    %11 = vector.load %arg1[%c1, %c0_11] : memref<3x2048xf32, #tpu.memory_space<vmem>>, vector<1x2048xf32>
    %12 = vector.broadcast %11 : vector<1x2048xf32> to vector<8x2048xf32>
    %13 = arith.mulf %10, %12 : vector<8x2048xf32>
    %14 = arith.addf %9, %13 : vector<8x2048xf32>
    %c0_12 = arith.constant 0 : index
    %c145 = arith.constant 145 : index
    %15 = vector.load %arg4[%c0_12, %c145] : memref<8x2304xf32, #tpu.memory_space<vmem>>, vector<8x2048xf32>
    %c2 = arith.constant 2 : index
    %c0_13 = arith.constant 0 : index
    %16 = vector.load %arg1[%c2, %c0_13] : memref<3x2048xf32, #tpu.memory_space<vmem>>, vector<1x2048xf32>
    %17 = vector.broadcast %16 : vector<1x2048xf32> to vector<8x2048xf32>
    %18 = arith.mulf %15, %17 : vector<8x2048xf32>
    %19 = arith.addf %14, %18 : vector<8x2048xf32>
    %c0_14 = arith.constant 0 : index
    %c0_15 = arith.constant 0 : index
    %20 = vector.load %arg3[%c0_14, %c0_15] : memref<8x2048xf32, #tpu.memory_space<vmem>>, vector<8x2048xf32>
    tpu.vector_store %arg3[%c0_14, %c0_15], %19 {strides = array<i32>} : memref<8x2048xf32, #tpu.memory_space<vmem>>, vector<8x2048xf32>,
    return
  }
  func.func @transform_0(%arg0: i32) -> (i32, i32) {
    %c0_i32 = arith.constant 0 : i32
    %c0_i32_0 = arith.constant 0 : i32
    %c0_i32_1 = arith.constant 0 : i32
    return %c0_i32, %c0_i32_0 : i32, i32
  }
  func.func @transform_1(%arg0: i32) -> (i32, i32) {
    %c0_i32 = arith.constant 0 : i32
    %c0_i32_0 = arith.constant 0 : i32
    return %arg0, %c0_i32 : i32, i32
  }
  func.func @transform_2(%arg0: i32) -> (i32, i32) {
    %c0_i32 = arith.constant 0 : i32
    %c0_i32_0 = arith.constant 0 : i32
    return %arg0, %c0_i32 : i32, i32
  }
}

</mosaic_0001>

<llo_original>
// kernel: fn.1
$region0: #{fn.1}
  #allocation0 [shape = 'u32[]', space=smem, size = 0x4, offset = 0x4, fixed_abs, tag = 'smem constant byte address 0x4 - core index']
  #allocation1 [shape = 'u32[144,128]{1,0:T(1,128)}', space=vmem, size = 0x12000, scoped, tag = 'internal scratch']
  #allocation2 [shape = 'f32[8,2304]{1,0:T(8,128)}', space=vmem, size = 0x12000, scoped, tag = 'scratch operand']
  %s0 = inlined_call_operand.vmem [shape: f32[3,2048], index: 0, kind: input, shape index: {}]
  %s1 = inlined_call_operand.vmem [shape: f32[8,2048], index: 1, kind: input, shape index: {}]
  %s2 = inlined_call_operand.vmem [shape: f32[8,2048], index: 2, kind: output, shape index: {}]
  %s3 = sld [smem:[#allocation0]]
  $region18: #{fn.1} parent=0
    _
  %s5 = ssub.s32 1, %s3
  %s6 = scalar_select 0, %s5, %s3
  // Predicated region
  $region2: #{fn.1} parent=0 // pred_check
    _
  $region3: #{fn.1} parent=0 // pred_check_branch
    %8 = sbr.rel (0) target = $region5
  $region4: #{fn.1} parent=0 // pred_region
    _
  $region5: #{fn.1} parent=0 // pred_fallthru
    _
  // Predicated region
  $region6: #{fn.1} parent=0 // pred_check
    _
  $region7: #{fn.1} parent=0 // pred_check_branch
    %10 = sbr.rel (0) target = $region9
  $region8: #{fn.1} parent=0 // pred_region
    _
  $region9: #{fn.1} parent=0 // pred_fallthru
    _
  %11 = vst [vmem:[#allocation2] sm:$0xff] 0.0
  %12 = vst [vmem:[#allocation2 + $0x88] sm:$0xff] 0.0
  %v13 = vld [vmem:[%s1] sm:$0xff]
  %v14 = vld [vmem:[%s1 + $0x8] sm:$0xff]
  %v15 = vld [vmem:[%s1 + $0x10] sm:$0xff]
  %v16 = vld [vmem:[%s1 + $0x18] sm:$0xff]
  %v17 = vld [vmem:[%s1 + $0x20] sm:$0xff]
  %v18 = vld [vmem:[%s1 + $0x28] sm:$0xff]
  %v19 = vld [vmem:[%s1 + $0x30] sm:$0xff]
  %v20 = vld [vmem:[%s1 + $0x38] sm:$0xff]
  %v21 = vld [vmem:[%s1 + $0x40] sm:$0xff]
  %v22 = vld [vmem:[%s1 + $0x48] sm:$0xff]
  %v23 = vld [vmem:[%s1 + $0x50] sm:$0xff]
  %v24 = vld [vmem:[%s1 + $0x58] sm:$0xff]
  %v25 = vld [vmem:[%s1 + $0x60] sm:$0xff]
  %v26 = vld [vmem:[%s1 + $0x68] sm:$0xff]
  %v27 = vld [vmem:[%s1 + $0x70] sm:$0xff]
  %v28 = vld [vmem:[%s1 + $0x78] sm:$0xff]
  %29 = vst [vmem:[#allocation2 + $0x8] sm:$0xff] %v13
  %30 = vst [vmem:[#allocation2 + $0x10] sm:$0xff] %v14
  %31 = vst [vmem:[#allocation2 + $0x18] sm:$0xff] %v15
  %32 = vst [vmem:[#allocation2 + $0x20] sm:$0xff] %v16
  %33 = vst [vmem:[#allocation2 + $0x28] sm:$0xff] %v17
  %34 = vst [vmem:[#allocation2 + $0x30] sm:$0xff] %v18
  %35 = vst [vmem:[#allocation2 + $0x38] sm:$0xff] %v19
  %36 = vst [vmem:[#allocation2 + $0x40] sm:$0xff] %v20
  %37 = vst [vmem:[#allocation2 + $0x48] sm:$0xff] %v21
  %38 = vst [vmem:[#allocation2 + $0x50] sm:$0xff] %v22
  %39 = vst [vmem:[#allocation2 + $0x58] sm:$0xff] %v23
  %40 = vst [vmem:[#allocation2 + $0x60] sm:$0xff] %v24
  %41 = vst [vmem:[#allocation2 + $0x68] sm:$0xff] %v25
  %42 = vst [vmem:[#allocation2 + $0x70] sm:$0xff] %v26
  %43 = vst [vmem:[#allocation2 + $0x78] sm:$0xff] %v27
  %44 = vst [vmem:[#allocation2 + $0x80] sm:$0xff] %v28
  %v45 = vld [vmem:[#allocation2] sm:$0xff]
  %v46 = vld [vmem:[#allocation2 + $0x8] sm:$0xff]
  %v47 = vld [vmem:[#allocation2 + $0x10] sm:$0xff]
  %v48 = vld [vmem:[#allocation2 + $0x18] sm:$0xff]
  %v49 = vld [vmem:[#allocation2 + $0x20] sm:$0xff]
  %v50 = vld [vmem:[#allocation2 + $0x28] sm:$0xff]
  %v51 = vld [vmem:[#allocation2 + $0x30] sm:$0xff]
  %v52 = vld [vmem:[#allocation2 + $0x38] sm:$0xff]
  %v53 = vld [vmem:[#allocation2 + $0x40] sm:$0xff]
  %v54 = vld [vmem:[#allocation2 + $0x48] sm:$0xff]
  %v55 = vld [vmem:[#allocation2 + $0x50] sm:$0xff]
  %v56 = vld [vmem:[#allocation2 + $0x58] sm:$0xff]
  %v57 = vld [vmem:[#allocation2 + $0x60] sm:$0xff]
  %v58 = vld [vmem:[#allocation2 + $0x68] sm:$0xff]
  %v59 = vld [vmem:[#allocation2 + $0x70] sm:$0xff]
  %v60 = vld [vmem:[#allocation2 + $0x78] sm:$0xff]
  %v61 = vld [vmem:[#allocation2 + $0x80] sm:$0xff]
  %v62 = vld [vmem:[%s0] ss:$4 sm:$0xff]
  %s63 = scalar_lea.vmem %s0, 32
  %v64 = vld [vmem:[%s63] ss:$4 sm:$0xff]
  %v67 = vlaneseq
  %v68 = vshrl.u32 %v67, 7
  %v69 = vsub.s32 0, %v68
  %v70 = vrot.slane %v62, %v69
  %v71 = vlaneseq
  %v72 = vshrl.u32 %v71, 7
  %v73 = vsub.s32 1, %v72
  %v74 = vrot.slane %v62, %v73
  %v75 = vlaneseq
  %v76 = vshrl.u32 %v75, 7
  %v77 = vsub.s32 2, %v76
  %v78 = vrot.slane %v62, %v77
  %v79 = vlaneseq
  %v80 = vshrl.u32 %v79, 7
  %v81 = vsub.s32 3, %v80
  %v82 = vrot.slane %v62, %v81
  %v83 = vlaneseq
  %v84 = vshrl.u32 %v83, 7
  %v85 = vsub.s32 4, %v84
  %v86 = vrot.slane %v62, %v85
  %v87 = vlaneseq
  %v88 = vshrl.u32 %v87, 7
  %v89 = vsub.s32 5, %v88
  %v90 = vrot.slane %v62, %v89
  %v91 = vlaneseq
  %v92 = vshrl.u32 %v91, 7
  %v93 = vsub.s32 6, %v92
  %v94 = vrot.slane %v62, %v93
  %v95 = vlaneseq
  %v96 = vshrl.u32 %v95, 7
  %v97 = vsub.s32 7, %v96
  %v98 = vrot.slane %v62, %v97
  %v99 = vlaneseq
  %v100 = vshrl.u32 %v99, 7
  %v101 = vsub.s32 0, %v100
  %v102 = vrot.slane %v64, %v101
  %v103 = vlaneseq
  %v104 = vshrl.u32 %v103, 7
  %v105 = vsub.s32 1, %v104
  %v106 = vrot.slane %v64, %v105
  %v107 = vlaneseq
  %v108 = vshrl.u32 %v107, 7
  %v109 = vsub.s32 2, %v108
  %v110 = vrot.slane %v64, %v109
  %v111 = vlaneseq
  %v112 = vshrl.u32 %v111, 7
  %v113 = vsub.s32 3, %v112
  %v114 = vrot.slane %v64, %v113
  %v115 = vlaneseq
  %v116 = vshrl.u32 %v115, 7
  %v117 = vsub.s32 4, %v116
  %v118 = vrot.slane %v64, %v117
  %v119 = vlaneseq
  %v120 = vshrl.u32 %v119, 7
  %v121 = vsub.s32 5, %v120
  %v122 = vrot.slane %v64, %v121
  %v123 = vlaneseq
  %v124 = vshrl.u32 %v123, 7
  %v125 = vsub.s32 6, %v124
  %v126 = vrot.slane %v64, %v125
  %v127 = vlaneseq
  %v128 = vshrl.u32 %v127, 7
  %v129 = vsub.s32 7, %v128
  %v130 = vrot.slane %v64, %v129
  %131 = vrot.lane.b32.xlu0 %v70, 111
  %v132 = vpop.permute.xlu0 %131
  %133 = vrot.lane.b32.xlu0 %v74, 111
  %v134 = vpop.permute.xlu0 %133
  %135 = vrot.lane.b32.xlu0 %v78, 111
  %v136 = vpop.permute.xlu0 %135
  %137 = vrot.lane.b32.xlu0 %v82, 111
  %v138 = vpop.permute.xlu0 %137
  %139 = vrot.lane.b32.xlu0 %v86, 111
  %v140 = vpop.permute.xlu0 %139
  %141 = vrot.lane.b32.xlu0 %v90, 111
  %v142 = vpop.permute.xlu0 %141
  %143 = vrot.lane.b32.xlu0 %v94, 111
  %v144 = vpop.permute.xlu0 %143
  %145 = vrot.lane.b32.xlu0 %v98, 111
  %v146 = vpop.permute.xlu0 %145
  %147 = vrot.lane.b32.xlu0 %v102, 111
  %v148 = vpop.permute.xlu0 %147
  %149 = vrot.lane.b32.xlu0 %v106, 111
  %v150 = vpop.permute.xlu0 %149
  %151 = vrot.lane.b32.xlu0 %v110, 111
  %v152 = vpop.permute.xlu0 %151
  %153 = vrot.lane.b32.xlu0 %v114, 111
  %v154 = vpop.permute.xlu0 %153
  %155 = vrot.lane.b32.xlu0 %v118, 111
  %v156 = vpop.permute.xlu0 %155
  %157 = vrot.lane.b32.xlu0 %v122, 111
  %v158 = vpop.permute.xlu0 %157
  %159 = vrot.lane.b32.xlu0 %v126, 111
  %v160 = vpop.permute.xlu0 %159
  %161 = vrot.lane.b32.xlu0 %v130, 111
  %v162 = vpop.permute.xlu0 %161
  %vm163 = vcmask 908288
  %v164 = vsel %vm163, %v132, %v134
  %v165 = vsel %vm163, %v134, %v136
  %v166 = vsel %vm163, %v136, %v138
  %v167 = vsel %vm163, %v138, %v140
  %v168 = vsel %vm163, %v140, %v142
  %v169 = vsel %vm163, %v142, %v144
  %v170 = vsel %vm163, %v144, %v146
  %v171 = vsel %vm163, %v146, %v148
  %v172 = vsel %vm163, %v148, %v150
  %v173 = vsel %vm163, %v150, %v152
  %v174 = vsel %vm163, %v152, %v154
  %v175 = vsel %vm163, %v154, %v156
  %v176 = vsel %vm163, %v156, %v158
  %v177 = vsel %vm163, %v158, %v160
  %v178 = vsel %vm163, %v160, %v162
  %v196 = vmul.f32 %v45, %v132
  %v197 = vmul.f32 %v46, %v164
  %v198 = vmul.f32 %v47, %v165
  %v199 = vmul.f32 %v48, %v166
  %v200 = vmul.f32 %v49, %v167
  %v201 = vmul.f32 %v50, %v168
  %v202 = vmul.f32 %v51, %v169
  %v203 = vmul.f32 %v52, %v170
  %v204 = vmul.f32 %v53, %v171
  %v205 = vmul.f32 %v54, %v172
  %v206 = vmul.f32 %v55, %v173
  %v207 = vmul.f32 %v56, %v174
  %v208 = vmul.f32 %v57, %v175
  %v209 = vmul.f32 %v58, %v176
  %v210 = vmul.f32 %v59, %v177
  %v211 = vmul.f32 %v60, %v178
  %v212 = vmul.f32 %v61, %v162
  %s213 = scalar_lea.vmem %s0, 1
  %v214 = vld [vmem:[%s213] ss:$4 sm:$0xff]
  %s215 = scalar_lea.vmem %s0, 33
  %v216 = vld [vmem:[%s215] ss:$4 sm:$0xff]
  %v219 = vlaneseq
  %v220 = vshrl.u32 %v219, 7
  %v221 = vsub.s32 0, %v220
  %v222 = vrot.slane %v214, %v221
  %v223 = vlaneseq
  %v224 = vshrl.u32 %v223, 7
  %v225 = vsub.s32 1, %v224
  %v226 = vrot.slane %v214, %v225
  %v227 = vlaneseq
  %v228 = vshrl.u32 %v227, 7
  %v229 = vsub.s32 2, %v228
  %v230 = vrot.slane %v214, %v229
  %v231 = vlaneseq
  %v232 = vshrl.u32 %v231, 7
  %v233 = vsub.s32 3, %v232
  %v234 = vrot.slane %v214, %v233
  %v235 = vlaneseq
  %v236 = vshrl.u32 %v235, 7
  %v237 = vsub.s32 4, %v236
  %v238 = vrot.slane %v214, %v237
  %v239 = vlaneseq
  %v240 = vshrl.u32 %v239, 7
  %v241 = vsub.s32 5, %v240
  %v242 = vrot.slane %v214, %v241
  %v243 = vlaneseq
  %v244 = vshrl.u32 %v243, 7
  %v245 = vsub.s32 6, %v244
  %v246 = vrot.slane %v214, %v245
  %v247 = vlaneseq
  %v248 = vshrl.u32 %v247, 7
  %v249 = vsub.s32 7, %v248
  %v250 = vrot.slane %v214, %v249
  %v251 = vlaneseq
  %v252 = vshrl.u32 %v251, 7
  %v253 = vsub.s32 0, %v252
  %v254 = vrot.slane %v216, %v253
  %v255 = vlaneseq
  %v256 = vshrl.u32 %v255, 7
  %v257 = vsub.s32 1, %v256
  %v258 = vrot.slane %v216, %v257
  %v259 = vlaneseq
  %v260 = vshrl.u32 %v259, 7
  %v261 = vsub.s32 2, %v260
  %v262 = vrot.slane %v216, %v261
  %v263 = vlaneseq
  %v264 = vshrl.u32 %v263, 7
  %v265 = vsub.s32 3, %v264
  %v266 = vrot.slane %v216, %v265
  %v267 = vlaneseq
  %v268 = vshrl.u32 %v267, 7
  %v269 = vsub.s32 4, %v268
  %v270 = vrot.slane %v216, %v269
  %v271 = vlaneseq
  %v272 = vshrl.u32 %v271, 7
  %v273 = vsub.s32 5, %v272
  %v274 = vrot.slane %v216, %v273
  %v275 = vlaneseq
  %v276 = vshrl.u32 %v275, 7
  %v277 = vsub.s32 6, %v276
  %v278 = vrot.slane %v216, %v277
  %v279 = vlaneseq
  %v280 = vshrl.u32 %v279, 7
  %v281 = vsub.s32 7, %v280
  %v282 = vrot.slane %v216, %v281
  %v299 = vmul.f32 %v46, %v222
  %v300 = vmul.f32 %v47, %v226
  %v301 = vmul.f32 %v48, %v230
  %v302 = vmul.f32 %v49, %v234
  %v303 = vmul.f32 %v50, %v238
  %v304 = vmul.f32 %v51, %v242
  %v305 = vmul.f32 %v52, %v246
  %v306 = vmul.f32 %v53, %v250
  %v307 = vmul.f32 %v54, %v254
  %v308 = vmul.f32 %v55, %v258
  %v309 = vmul.f32 %v56, %v262
  %v310 = vmul.f32 %v57, %v266
  %v311 = vmul.f32 %v58, %v270
  %v312 = vmul.f32 %v59, %v274
  %v313 = vmul.f32 %v60, %v278
  %v314 = vmul.f32 %v61, %v282
  %331 = vrot.lane.b32.xlu0 %v299, 111
  %v332 = vpop.permute.xlu0 %331
  %333 = vrot.lane.b32.xlu0 %v300, 111
  %v334 = vpop.permute.xlu0 %333
  %335 = vrot.lane.b32.xlu0 %v301, 111
  %v336 = vpop.permute.xlu0 %335
  %337 = vrot.lane.b32.xlu0 %v302, 111
  %v338 = vpop.permute.xlu0 %337
  %339 = vrot.lane.b32.xlu0 %v303, 111
  %v340 = vpop.permute.xlu0 %339
  %341 = vrot.lane.b32.xlu0 %v304, 111
  %v342 = vpop.permute.xlu0 %341
  %343 = vrot.lane.b32.xlu0 %v305, 111
  %v344 = vpop.permute.xlu0 %343
  %345 = vrot.lane.b32.xlu0 %v306, 111
  %v346 = vpop.permute.xlu0 %345
  %347 = vrot.lane.b32.xlu0 %v307, 111
  %v348 = vpop.permute.xlu0 %347
  %349 = vrot.lane.b32.xlu0 %v308, 111
  %v350 = vpop.permute.xlu0 %349
  %351 = vrot.lane.b32.xlu0 %v309, 111
  %v352 = vpop.permute.xlu0 %351
  %353 = vrot.lane.b32.xlu0 %v310, 111
  %v354 = vpop.permute.xlu0 %353
  %355 = vrot.lane.b32.xlu0 %v311, 111
  %v356 = vpop.permute.xlu0 %355
  %357 = vrot.lane.b32.xlu0 %v312, 111
  %v358 = vpop.permute.xlu0 %357
  %359 = vrot.lane.b32.xlu0 %v313, 111
  %v360 = vpop.permute.xlu0 %359
  %361 = vrot.lane.b32.xlu0 %v314, 111
  %v362 = vpop.permute.xlu0 %361
  %v363 = vsel %vm163, %v332, %v334
  %v364 = vsel %vm163, %v334, %v336
  %v365 = vsel %vm163, %v336, %v338
  %v366 = vsel %vm163, %v338, %v340
  %v367 = vsel %vm163, %v340, %v342
  %v368 = vsel %vm163, %v342, %v344
  %v369 = vsel %vm163, %v344, %v346
  %v370 = vsel %vm163, %v346, %v348
  %v371 = vsel %vm163, %v348, %v350
  %v372 = vsel %vm163, %v350, %v352
  %v373 = vsel %vm163, %v352, %v354
  %v374 = vsel %vm163, %v354, %v356
  %v375 = vsel %vm163, %v356, %v358
  %v376 = vsel %vm163, %v358, %v360
  %v377 = vsel %vm163, %v360, %v362
  %v395 = vadd.f32 %v196, %v332
  %v396 = vadd.f32 %v197, %v363
  %v397 = vadd.f32 %v198, %v364
  %v398 = vadd.f32 %v199, %v365
  %v399 = vadd.f32 %v200, %v366
  %v400 = vadd.f32 %v201, %v367
  %v401 = vadd.f32 %v202, %v368
  %v402 = vadd.f32 %v203, %v369
  %v403 = vadd.f32 %v204, %v370
  %v404 = vadd.f32 %v205, %v371
  %v405 = vadd.f32 %v206, %v372
  %v406 = vadd.f32 %v207, %v373
  %v407 = vadd.f32 %v208, %v374
  %v408 = vadd.f32 %v209, %v375
  %v409 = vadd.f32 %v210, %v376
  %v410 = vadd.f32 %v211, %v377
  %v411 = vadd.f32 %v212, %v362
  %v412 = vld [vmem:[#allocation2 + $0x8] sm:$0xff]
  %v413 = vld [vmem:[#allocation2 + $0x10] sm:$0xff]
  %v414 = vld [vmem:[#allocation2 + $0x18] sm:$0xff]
  %v415 = vld [vmem:[#allocation2 + $0x20] sm:$0xff]
  %v416 = vld [vmem:[#allocation2 + $0x28] sm:$0xff]
  %v417 = vld [vmem:[#allocation2 + $0x30] sm:$0xff]
  %v418 = vld [vmem:[#allocation2 + $0x38] sm:$0xff]
  %v419 = vld [vmem:[#allocation2 + $0x40] sm:$0xff]
  %v420 = vld [vmem:[#allocation2 + $0x48] sm:$0xff]
  %v421 = vld [vmem:[#allocation2 + $0x50] sm:$0xff]
  %v422 = vld [vmem:[#allocation2 + $0x58] sm:$0xff]
  %v423 = vld [vmem:[#allocation2 + $0x60] sm:$0xff]
  %v424 = vld [vmem:[#allocation2 + $0x68] sm:$0xff]
  %v425 = vld [vmem:[#allocation2 + $0x70] sm:$0xff]
  %v426 = vld [vmem:[#allocation2 + $0x78] sm:$0xff]
  %v427 = vld [vmem:[#allocation2 + $0x80] sm:$0xff]
  %v428 = vld [vmem:[#allocation2 + $0x88] sm:$0xff]
  %s429 = scalar_lea.vmem %s0, 2
  %v430 = vld [vmem:[%s429] ss:$4 sm:$0xff]
  %s431 = scalar_lea.vmem %s0, 34
  %v432 = vld [vmem:[%s431] ss:$4 sm:$0xff]
  %v435 = vlaneseq
  %v436 = vshrl.u32 %v435, 7
  %v437 = vsub.s32 0, %v436
  %v438 = vrot.slane %v430, %v437
  %v439 = vlaneseq
  %v440 = vshrl.u32 %v439, 7
  %v441 = vsub.s32 1, %v440
  %v442 = vrot.slane %v430, %v441
  %v443 = vlaneseq
  %v444 = vshrl.u32 %v443, 7
  %v445 = vsub.s32 2, %v444
  %v446 = vrot.slane %v430, %v445
  %v447 = vlaneseq
  %v448 = vshrl.u32 %v447, 7
  %v449 = vsub.s32 3, %v448
  %v450 = vrot.slane %v430, %v449
  %v451 = vlaneseq
  %v452 = vshrl.u32 %v451, 7
  %v453 = vsub.s32 4, %v452
  %v454 = vrot.slane %v430, %v453
  %v455 = vlaneseq
  %v456 = vshrl.u32 %v455, 7
  %v457 = vsub.s32 5, %v456
  %v458 = vrot.slane %v430, %v457
  %v459 = vlaneseq
  %v460 = vshrl.u32 %v459, 7
  %v461 = vsub.s32 6, %v460
  %v462 = vrot.slane %v430, %v461
  %v463 = vlaneseq
  %v464 = vshrl.u32 %v463, 7
  %v465 = vsub.s32 7, %v464
  %v466 = vrot.slane %v430, %v465
  %v467 = vlaneseq
  %v468 = vshrl.u32 %v467, 7
  %v469 = vsub.s32 0, %v468
  %v470 = vrot.slane %v432, %v469
  %v471 = vlaneseq
  %v472 = vshrl.u32 %v471, 7
  %v473 = vsub.s32 1, %v472
  %v474 = vrot.slane %v432, %v473
  %v475 = vlaneseq
  %v476 = vshrl.u32 %v475, 7
  %v477 = vsub.s32 2, %v476
  %v478 = vrot.slane %v432, %v477
  %v479 = vlaneseq
  %v480 = vshrl.u32 %v479, 7
  %v481 = vsub.s32 3, %v480
  %v482 = vrot.slane %v432, %v481
  %v483 = vlaneseq
  %v484 = vshrl.u32 %v483, 7
  %v485 = vsub.s32 4, %v484
  %v486 = vrot.slane %v432, %v485
  %v487 = vlaneseq
  %v488 = vshrl.u32 %v487, 7
  %v489 = vsub.s32 5, %v488
  %v490 = vrot.slane %v432, %v489
  %v491 = vlaneseq
  %v492 = vshrl.u32 %v491, 7
  %v493 = vsub.s32 6, %v492
  %v494 = vrot.slane %v432, %v493
  %v495 = vlaneseq
  %v496 = vshrl.u32 %v495, 7
  %v497 = vsub.s32 7, %v496
  %v498 = vrot.slane %v432, %v497
  %499 = vrot.lane.b32.xlu0 %v438, 17
  %v500 = vpop.permute.xlu0 %499
  %501 = vrot.lane.b32.xlu0 %v442, 17
  %v502 = vpop.permute.xlu0 %501
  %503 = vrot.lane.b32.xlu0 %v446, 17
  %v504 = vpop.permute.xlu0 %503
  %505 = vrot.lane.b32.xlu0 %v450, 17
  %v506 = vpop.permute.xlu0 %505
  %507 = vrot.lane.b32.xlu0 %v454, 17
  %v508 = vpop.permute.xlu0 %507
  %509 = vrot.lane.b32.xlu0 %v458, 17
  %v510 = vpop.permute.xlu0 %509
  %511 = vrot.lane.b32.xlu0 %v462, 17
  %v512 = vpop.permute.xlu0 %511
  %513 = vrot.lane.b32.xlu0 %v466, 17
  %v514 = vpop.permute.xlu0 %513
  %515 = vrot.lane.b32.xlu0 %v470, 17
  %v516 = vpop.permute.xlu0 %515
  %517 = vrot.lane.b32.xlu0 %v474, 17
  %v518 = vpop.permute.xlu0 %517
  %519 = vrot.lane.b32.xlu0 %v478, 17
  %v520 = vpop.permute.xlu0 %519
  %521 = vrot.lane.b32.xlu0 %v482, 17
  %v522 = vpop.permute.xlu0 %521
  %523 = vrot.lane.b32.xlu0 %v486, 17
  %v524 = vpop.permute.xlu0 %523
  %525 = vrot.lane.b32.xlu0 %v490, 17
  %v526 = vpop.permute.xlu0 %525
  %527 = vrot.lane.b32.xlu0 %v494, 17
  %v528 = vpop.permute.xlu0 %527
  %529 = vrot.lane.b32.xlu0 %v498, 17
  %v530 = vpop.permute.xlu0 %529
  %vm531 = vcmask 138240
  %v532 = vsel %vm531, %v500, %v502
  %v533 = vsel %vm531, %v502, %v504
  %v534 = vsel %vm531, %v504, %v506
  %v535 = vsel %vm531, %v506, %v508
  %v536 = vsel %vm531, %v508, %v510
  %v537 = vsel %vm531, %v510, %v512
  %v538 = vsel %vm531, %v512, %v514
  %v539 = vsel %vm531, %v514, %v516
  %v540 = vsel %vm531, %v516, %v518
  %v541 = vsel %vm531, %v518, %v520
  %v542 = vsel %vm531, %v520, %v522
  %v543 = vsel %vm531, %v522, %v524
  %v544 = vsel %vm531, %v524, %v526
  %v545 = vsel %vm531, %v526, %v528
  %v546 = vsel %vm531, %v528, %v530
  %v564 = vmul.f32 %v412, %v500
  %v565 = vmul.f32 %v413, %v532
  %v566 = vmul.f32 %v414, %v533
  %v567 = vmul.f32 %v415, %v534
  %v568 = vmul.f32 %v416, %v535
  %v569 = vmul.f32 %v417, %v536
  %v570 = vmul.f32 %v418, %v537
  %v571 = vmul.f32 %v419, %v538
  %v572 = vmul.f32 %v420, %v539
  %v573 = vmul.f32 %v421, %v540
  %v574 = vmul.f32 %v422, %v541
  %v575 = vmul.f32 %v423, %v542
  %v576 = vmul.f32 %v424, %v543
  %v577 = vmul.f32 %v425, %v544
  %v578 = vmul.f32 %v426, %v545
  %v579 = vmul.f32 %v427, %v546
  %v580 = vmul.f32 %v428, %v530
  %598 = vrot.lane.b32.xlu0 %v564, 94
  %v599 = vpop.permute.xlu0 %598
  %600 = vrot.lane.b32.xlu0 %v565, 94
  %v601 = vpop.permute.xlu0 %600
  %602 = vrot.lane.b32.xlu0 %v566, 94
  %v603 = vpop.permute.xlu0 %602
  %604 = vrot.lane.b32.xlu0 %v567, 94
  %v605 = vpop.permute.xlu0 %604
  %606 = vrot.lane.b32.xlu0 %v568, 94
  %v607 = vpop.permute.xlu0 %606
  %608 = vrot.lane.b32.xlu0 %v569, 94
  %v609 = vpop.permute.xlu0 %608
  %610 = vrot.lane.b32.xlu0 %v570, 94
  %v611 = vpop.permute.xlu0 %610
  %612 = vrot.lane.b32.xlu0 %v571, 94
  %v613 = vpop.permute.xlu0 %612
  %614 = vrot.lane.b32.xlu0 %v572, 94
  %v615 = vpop.permute.xlu0 %614
  %616 = vrot.lane.b32.xlu0 %v573, 94
  %v617 = vpop.permute.xlu0 %616
  %618 = vrot.lane.b32.xlu0 %v574, 94
  %v619 = vpop.permute.xlu0 %618
  %620 = vrot.lane.b32.xlu0 %v575, 94
  %v621 = vpop.permute.xlu0 %620
  %622 = vrot.lane.b32.xlu0 %v576, 94
  %v623 = vpop.permute.xlu0 %622
  %624 = vrot.lane.b32.xlu0 %v577, 94
  %v625 = vpop.permute.xlu0 %624
  %626 = vrot.lane.b32.xlu0 %v578, 94
  %v627 = vpop.permute.xlu0 %626
  %628 = vrot.lane.b32.xlu0 %v579, 94
  %v629 = vpop.permute.xlu0 %628
  %630 = vrot.lane.b32.xlu0 %v580, 94
  %v631 = vpop.permute.xlu0 %630
  %vm632 = vcmask 769024
  %v633 = vsel %vm632, %v599, %v601
  %v634 = vsel %vm632, %v601, %v603
  %v635 = vsel %vm632, %v603, %v605
  %v636 = vsel %vm632, %v605, %v607
  %v637 = vsel %vm632, %v607, %v609
  %v638 = vsel %vm632, %v609, %v611
  %v639 = vsel %vm632, %v611, %v613
  %v640 = vsel %vm632, %v613, %v615
  %v641 = vsel %vm632, %v615, %v617
  %v642 = vsel %vm632, %v617, %v619
  %v643 = vsel %vm632, %v619, %v621
  %v644 = vsel %vm632, %v621, %v623
  %v645 = vsel %vm632, %v623, %v625
  %v646 = vsel %vm632, %v625, %v627
  %v647 = vsel %vm632, %v627, %v629
  %v648 = vsel %vm632, %v629, %v631
  %v666 = vadd.f32 %v395, %v599
  %v667 = vadd.f32 %v396, %v633
  %v668 = vadd.f32 %v397, %v634
  %v669 = vadd.f32 %v398, %v635
  %v670 = vadd.f32 %v399, %v636
  %v671 = vadd.f32 %v400, %v637
  %v672 = vadd.f32 %v401, %v638
  %v673 = vadd.f32 %v402, %v639
  %v674 = vadd.f32 %v403, %v640
  %v675 = vadd.f32 %v404, %v641
  %v676 = vadd.f32 %v405, %v642
  %v677 = vadd.f32 %v406, %v643
  %v678 = vadd.f32 %v407, %v644
  %v679 = vadd.f32 %v408, %v645
  %v680 = vadd.f32 %v409, %v646
  %v681 = vadd.f32 %v410, %v647
  %v682 = vadd.f32 %v411, %v648
  %700 = vrot.lane.b32.xlu0 %v666, 17
  %v701 = vpop.permute.xlu0 %700
  %702 = vrot.lane.b32.xlu0 %v667, 17
  %v703 = vpop.permute.xlu0 %702
  %704 = vrot.lane.b32.xlu0 %v668, 17
  %v705 = vpop.permute.xlu0 %704
  %706 = vrot.lane.b32.xlu0 %v669, 17
  %v707 = vpop.permute.xlu0 %706
  %708 = vrot.lane.b32.xlu0 %v670, 17
  %v709 = vpop.permute.xlu0 %708
  %710 = vrot.lane.b32.xlu0 %v671, 17
  %v711 = vpop.permute.xlu0 %710
  %712 = vrot.lane.b32.xlu0 %v672, 17
  %v713 = vpop.permute.xlu0 %712
  %714 = vrot.lane.b32.xlu0 %v673, 17
  %v715 = vpop.permute.xlu0 %714
  %716 = vrot.lane.b32.xlu0 %v674, 17
  %v717 = vpop.permute.xlu0 %716
  %718 = vrot.lane.b32.xlu0 %v675, 17
  %v719 = vpop.permute.xlu0 %718
  %720 = vrot.lane.b32.xlu0 %v676, 17
  %v721 = vpop.permute.xlu0 %720
  %722 = vrot.lane.b32.xlu0 %v677, 17
  %v723 = vpop.permute.xlu0 %722
  %724 = vrot.lane.b32.xlu0 %v678, 17
  %v725 = vpop.permute.xlu0 %724
  %726 = vrot.lane.b32.xlu0 %v679, 17
  %v727 = vpop.permute.xlu0 %726
  %728 = vrot.lane.b32.xlu0 %v680, 17
  %v729 = vpop.permute.xlu0 %728
  %730 = vrot.lane.b32.xlu0 %v681, 17
  %v731 = vpop.permute.xlu0 %730
  %732 = vrot.lane.b32.xlu0 %v682, 17
  %v733 = vpop.permute.xlu0 %732
  %v734 = vsel %vm531, %v701, %v703
  %v735 = vsel %vm531, %v703, %v705
  %v736 = vsel %vm531, %v705, %v707
  %v737 = vsel %vm531, %v707, %v709
  %v738 = vsel %vm531, %v709, %v711
  %v739 = vsel %vm531, %v711, %v713
  %v740 = vsel %vm531, %v713, %v715
  %v741 = vsel %vm531, %v715, %v717
  %v742 = vsel %vm531, %v717, %v719
  %v743 = vsel %vm531, %v719, %v721
  %v744 = vsel %vm531, %v721, %v723
  %v745 = vsel %vm531, %v723, %v725
  %v746 = vsel %vm531, %v725, %v727
  %v747 = vsel %vm531, %v727, %v729
  %v748 = vsel %vm531, %v729, %v731
  %v749 = vsel %vm531, %v731, %v733
  %766 = vst [vmem:[%s2] sm:$0xff] %v734
  %767 = vst [vmem:[%s2 + $0x8] sm:$0xff] %v735
  %768 = vst [vmem:[%s2 + $0x10] sm:$0xff] %v736
  %769 = vst [vmem:[%s2 + $0x18] sm:$0xff] %v737
  %770 = vst [vmem:[%s2 + $0x20] sm:$0xff] %v738
  %771 = vst [vmem:[%s2 + $0x28] sm:$0xff] %v739
  %772 = vst [vmem:[%s2 + $0x30] sm:$0xff] %v740
  %773 = vst [vmem:[%s2 + $0x38] sm:$0xff] %v741
  %774 = vst [vmem:[%s2 + $0x40] sm:$0xff] %v742
  %775 = vst [vmem:[%s2 + $0x48] sm:$0xff] %v743
  %776 = vst [vmem:[%s2 + $0x50] sm:$0xff] %v744
  %777 = vst [vmem:[%s2 + $0x58] sm:$0xff] %v745
  %778 = vst [vmem:[%s2 + $0x60] sm:$0xff] %v746
  %779 = vst [vmem:[%s2 + $0x68] sm:$0xff] %v747
  %780 = vst [vmem:[%s2 + $0x70] sm:$0xff] %v748
  %781 = vst [vmem:[%s2 + $0x78] sm:$0xff] %v749
  // Predicated region
  $region10: #{fn.1} parent=0 // pred_check
    _
  $region11: #{fn.1} parent=0 // pred_check_branch
    %783 = sbr.rel (0) target = $region13
  $region12: #{fn.1} parent=0 // pred_region
    _
  $region13: #{fn.1} parent=0 // pred_fallthru
    _
  // Predicated region
  $region14: #{fn.1} parent=0 // pred_check
    _
  $region15: #{fn.1} parent=0 // pred_check_branch
    %785 = sbr.rel (0) target = $region17
  $region16: #{fn.1} parent=0 // pred_region
    _
  $region17: #{fn.1} parent=0 // pred_fallthru
    _

</llo_original>
